<compile_context>
chip_gen: v7x
topology: tpu7x:2x2x1
jax: 0.10.0
libtpu: 0.0.40
codegen_flags: <defaults>
</compile_context>

<pallas_src>
import jax
import jax.numpy as jnp
from jax.experimental import pallas as pl
from jax.experimental.pallas import tpu as pltpu

K = 4          # conv-transpose kernel size
P = K * K      # spatial positions produced from a 1x1 input
BN_EPS = 1e-5


def input_layer_kernel(z_ref, w_ref, gf_ref, bf_ref, a_ref, o_ref):
    # ConvTranspose2d on a 1x1 input == one MXU matmul (bf16 operands, f32 acc).
    y = jnp.dot(z_ref[...], w_ref[...],
                preferred_element_type=jnp.float32)            # (N, C2p*P) f32

    # BatchNorm2d, training-mode batch statistics (biased variance), via the
    # fused group-average matrix A (block-diagonal ones(P,P)/(N*P) per channel):
    #   mean_full = (sum_n y)   @ A    per-channel mean broadcast to its P cols
    #   msq_full  = (sum_n y*y) @ A    per-channel E[y^2], same broadcast
    col_sum = jnp.sum(y, axis=0, keepdims=True)                # (1, C2p*P)
    col_sumsq = jnp.sum(y * y, axis=0, keepdims=True)          # (1, C2p*P)
    a_mat = a_ref[...]
    mean_full = jnp.dot(col_sum, a_mat, preferred_element_type=jnp.float32)
    msq_full = jnp.dot(col_sumsq, a_mat, preferred_element_type=jnp.float32)
    var_full = msq_full - mean_full * mean_full                # biased variance
    inv_full = jax.lax.rsqrt(var_full + BN_EPS)

    # Fold BN affine into a single scale/shift row pair.
    scale = inv_full * gf_ref[...]
    shift = bf_ref[...] - mean_full * scale
    yn = y * scale + shift

    # GLU along channels; the split point is lane-aligned (multiple of 128).
    half = yn.shape[1] // 2
    o_ref[...] = yn[:, :half] * jax.nn.sigmoid(yn[:, half:])


def init_params(key, in_ch, out_ch):
    """Deterministic synthetic parameters mirroring weights_init + spectral norm,
    with channels zero-padded so each GLU half is a multiple of 128 lanes."""
    c2 = out_ch * 2
    out_ch_pad = pl.cdiv(out_ch * P, 128) * 128 // P           # lane-dense GLU half
    c2_pad = 2 * out_ch_pad
    k_w, k_g, k_u = jax.random.split(key, 3)

    # weights_init: Conv weights ~ N(0, 0.02); BN weight ~ N(1, 0.02), bias 0.
    w = 0.02 * jax.random.normal(k_w, (in_ch, c2, K, K), jnp.float32)
    gamma = 1.0 + 0.02 * jax.random.normal(k_g, (c2,), jnp.float32)
    beta = jnp.zeros((c2,), jnp.float32)

    # Spectral norm (PyTorch uses dim=1 for ConvTranspose2d): one power iteration
    # from a deterministic u.
    # TODO(synk): the stateful u/v power-iteration buffer updates (and BN
    # running-stat updates) are training-time side effects handled outside the
    # kernel; only the forward math is implemented in Pallas.
    wm = jnp.transpose(w, (1, 0, 2, 3)).reshape(c2, -1)
    u = jax.random.normal(k_u, (c2,), jnp.float32)
    u = u / (jnp.linalg.norm(u) + 1e-12)
    v = wm.T @ u
    v = v / (jnp.linalg.norm(v) + 1e-12)
    u = wm @ v
    u = u / (jnp.linalg.norm(u) + 1e-12)
    sigma = u @ (wm @ v)
    w_sn = w / sigma                                           # (Cin, C2, K, K)

    # Zero-pad channels: real first-half channels -> padded [0, out_ch),
    # real second-half channels -> padded [out_ch_pad, out_ch_pad + out_ch).
    w_pad = jnp.zeros((in_ch, c2_pad, K, K), jnp.float32)
    w_pad = w_pad.at[:, :out_ch].set(w_sn[:, :out_ch])
    w_pad = w_pad.at[:, out_ch_pad:out_ch_pad + out_ch].set(w_sn[:, out_ch:])
    gamma_pad = jnp.ones((c2_pad,), jnp.float32)
    gamma_pad = gamma_pad.at[:out_ch].set(gamma[:out_ch])
    gamma_pad = gamma_pad.at[out_ch_pad:out_ch_pad + out_ch].set(gamma[out_ch:])
    beta_pad = jnp.zeros((c2_pad,), jnp.float32)
    beta_pad = beta_pad.at[:out_ch].set(beta[:out_ch])
    beta_pad = beta_pad.at[out_ch_pad:out_ch_pad + out_ch].set(beta[out_ch:])

    # Kernel-facing params: columns ordered (co_pad, kh, kw); conv weight in bf16.
    w_kernel = w_pad.reshape(in_ch, c2_pad * P).astype(jnp.bfloat16)
    gamma_full = jnp.repeat(gamma_pad, P).reshape(1, c2_pad * P)
    beta_full = jnp.repeat(beta_pad, P).reshape(1, c2_pad * P)
    return w_sn, gamma, beta, w_kernel, gamma_full, beta_full


def input_layer_forward(z, w_kernel, gamma_full, beta_full, out_ch):
    """z: NCHW (N, Cin, 1, 1) -> NCHW (N, out_ch, 4, 4)."""
    n, cin = z.shape[0], z.shape[1]
    assert z.shape[2] == 1 and z.shape[3] == 1, "InputLayer expects a 1x1 latent"
    c2p_pad = w_kernel.shape[1]
    c2_pad = c2p_pad // P
    out_ch_pad = c2_pad // 2

    # Fused group-average matrix (block-diagonal ones(P,P) per channel, scaled by
    # 1/(N*P)). Built from the FULL batch size so BN stats are full-batch stats.
    a_mat = jnp.kron(jnp.eye(c2_pad, dtype=jnp.float32),
                     jnp.ones((P, P), jnp.float32)) / float(n * P)

    zm = z.reshape(n, cin).astype(jnp.bfloat16)

    out2d = pl.pallas_call(
        input_layer_kernel,
        out_shape=jax.ShapeDtypeStruct((n, out_ch_pad * P), jnp.float32),
        grid=(1,),
        in_specs=[
            pl.BlockSpec((n, cin), lambda i: (0, 0)),
            pl.BlockSpec((cin, c2p_pad), lambda i: (0, 0)),
            pl.BlockSpec((1, c2p_pad), lambda i: (0, 0)),
            pl.BlockSpec((1, c2p_pad), lambda i: (0, 0)),
            pl.BlockSpec((c2p_pad, c2p_pad), lambda i: (0, 0)),
        ],
        out_specs=pl.BlockSpec((n, out_ch_pad * P), lambda i: (0, 0)),
        compiler_params=pltpu.CompilerParams(
            dimension_semantics=("arbitrary",)),
    )(zm, w_kernel, gamma_full, beta_full, a_mat)

    # Real GLU-output channels occupy columns [0, out_ch*P); columns were ordered
    # (co, kh, kw) so a straight reshape recovers NCHW (N, out_ch, 4, 4).
    return out2d[:, :out_ch * P].reshape(n, out_ch, K, K)


def reference_forward(z, w_sn, gamma, beta, out_ch):
    """Pure-JAX reference (conv-T on 1x1 latent + train-mode BN + GLU).
    Conv operands are rounded to bf16 exactly like the kernel path, so the
    comparison validates the kernel math rather than bf16 quantization."""
    n, cin = z.shape[0], z.shape[1]
    zm = z.reshape(n, cin).astype(jnp.bfloat16).astype(jnp.float32)
    w = w_sn.astype(jnp.bfloat16).astype(jnp.float32)
    y = jnp.einsum("nc,cokl->nokl", zm, w,
                   precision=jax.lax.Precision.HIGHEST)        # (N, C2, K, K)
    mean = jnp.mean(y, axis=(0, 2, 3), keepdims=True)
    var = jnp.mean((y - mean) ** 2, axis=(0, 2, 3), keepdims=True)
    yn = (y - mean) * jax.lax.rsqrt(var + BN_EPS)
    yn = yn * gamma.reshape(1, -1, 1, 1) + beta.reshape(1, -1, 1, 1)
    a, b = yn[:, :out_ch], yn[:, out_ch:]
    return a * jax.nn.sigmoid(b)


if __name__ == "__main__":
    N, IN_CH, OUT_CH = 2, 32, 3

    key = jax.random.PRNGKey(0)
    k_param, k_z = jax.random.split(key)
    (w_sn, gamma, beta,
     w_kernel, gamma_full, beta_full) = init_params(k_param, IN_CH, OUT_CH)

    z = jax.random.normal(k_z, (N, IN_CH, 1, 1), jnp.float32)   # NCHW latent

    out = input_layer_forward(z, w_kernel, gamma_full, beta_full, OUT_CH)
    out = jax.block_until_ready(out)

    ref = reference_forward(z, w_sn, gamma, beta, OUT_CH)
    assert out.shape == (N, OUT_CH, K, K)
    assert jnp.allclose(out, ref, atol=1e-4, rtol=1e-4), "kernel mismatch vs reference"

    print("KERNEL_OK")
</pallas_src>

<mosaic_0001>
module attributes {stable_mosaic.version = 11 : i64} {
  func.func @input_layer_kernel(%arg0: i32, %arg1: memref<2x32xbf16, #tpu.memory_space<vmem>>, %arg2: memref<32x256xbf16, #tpu.memory_space<vmem>>, %arg3: memref<1x256xf32, #tpu.memory_space<vmem>>, %arg4: memref<1x256xf32, #tpu.memory_space<vmem>>, %arg5: memref<256x256xf32, #tpu.memory_space<vmem>>, %arg6: memref<2x128xf32, #tpu.memory_space<vmem>>) attributes {dimension_semantics = [#tpu.dimension_semantics<arbitrary>], iteration_bounds = array<i64: 1>, scalar_prefetch = 0 : i64, scratch_operands = 0 : i64, tpu.core_type = #tpu.core_type<tc>, window_params = [{pipeline_mode = #tpu.pipeline_mode<synchronous>, transform_indices = @transform_0, window_bounds = array<i64: 2, 32>}, {pipeline_mode = #tpu.pipeline_mode<synchronous>, transform_indices = @transform_1, window_bounds = array<i64: 32, 256>}, {pipeline_mode = #tpu.pipeline_mode<synchronous>, transform_indices = @transform_2, window_bounds = array<i64: 1, 256>}, {pipeline_mode = #tpu.pipeline_mode<synchronous>, transform_indices = @transform_3, window_bounds = array<i64: 1, 256>}, {pipeline_mode = #tpu.pipeline_mode<synchronous>, transform_indices = @transform_4, window_bounds = array<i64: 256, 256>}, {pipeline_mode = #tpu.pipeline_mode<synchronous>, transform_indices = @transform_5, window_bounds = array<i64: 2, 128>}]} {
    %c0 = arith.constant 0 : index
    %c0_0 = arith.constant 0 : index
    %0 = vector.load %arg1[%c0, %c0_0] : memref<2x32xbf16, #tpu.memory_space<vmem>>, vector<2x32xbf16>
    %c0_1 = arith.constant 0 : index
    %c0_2 = arith.constant 0 : index
    %1 = vector.load %arg2[%c0_1, %c0_2] : memref<32x256xbf16, #tpu.memory_space<vmem>>, vector<32x256xbf16>
    %cst = arith.constant dense<0.000000e+00> : vector<2x256xf32>
    %2 = tpu.matmul %0, %1, %cst {dimension_numbers = #tpu.dot_dimension_numbers<[1], [0], [0], [1], [0, 0, 1, 1], [], []>} : vector<2x32xbf16>, vector<32x256xbf16>, vector<2x256xf32> -> vector<2x256xf32>
    %cst_3 = arith.constant dense<0.000000e+00> : vector<256xf32>
    %3 = vector.multi_reduction <add>, %2, %cst_3 [0] : vector<2x256xf32> to vector<256xf32>
    %4 = vector.shape_cast %3 : vector<256xf32> to vector<1x256xf32>
    %5 = arith.mulf %2, %2 : vector<2x256xf32>
    %cst_4 = arith.constant dense<0.000000e+00> : vector<256xf32>
    %6 = vector.multi_reduction <add>, %5, %cst_4 [0] : vector<2x256xf32> to vector<256xf32>
    %7 = vector.shape_cast %6 : vector<256xf32> to vector<1x256xf32>
    %c0_5 = arith.constant 0 : index
    %c0_6 = arith.constant 0 : index
    %8 = vector.load %arg5[%c0_5, %c0_6] : memref<256x256xf32, #tpu.memory_space<vmem>>, vector<256x256xf32>
    %cst_7 = arith.constant dense<0.000000e+00> : vector<1x256xf32>
    %9 = tpu.matmul %4, %8, %cst_7 {dimension_numbers = #tpu.dot_dimension_numbers<[1], [0], [0], [1], [0, 0, 1, 1], [], []>} : vector<1x256xf32>, vector<256x256xf32>, vector<1x256xf32> -> vector<1x256xf32>
    %cst_8 = arith.constant dense<0.000000e+00> : vector<1x256xf32>
    %10 = tpu.matmul %7, %8, %cst_8 {dimension_numbers = #tpu.dot_dimension_numbers<[1], [0], [0], [1], [0, 0, 1, 1], [], []>} : vector<1x256xf32>, vector<256x256xf32>, vector<1x256xf32> -> vector<1x256xf32>
    %11 = arith.mulf %9, %9 : vector<1x256xf32>
    %12 = arith.subf %10, %11 : vector<1x256xf32>
    %cst_9 = arith.constant 9.99999974E-6 : f32
    %13 = vector.broadcast %cst_9 : f32 to vector<1x256xf32>
    %14 = arith.addf %12, %13 : vector<1x256xf32>
    %15 = math.rsqrt %14 : vector<1x256xf32>
    %c0_10 = arith.constant 0 : index
    %c0_11 = arith.constant 0 : index
    %16 = vector.load %arg3[%c0_10, %c0_11] : memref<1x256xf32, #tpu.memory_space<vmem>>, vector<1x256xf32>
    %17 = arith.mulf %15, %16 : vector<1x256xf32>
    %c0_12 = arith.constant 0 : index
    %c0_13 = arith.constant 0 : index
    %18 = vector.load %arg4[%c0_12, %c0_13] : memref<1x256xf32, #tpu.memory_space<vmem>>, vector<1x256xf32>
    %19 = arith.mulf %9, %17 : vector<1x256xf32>
    %20 = arith.subf %18, %19 : vector<1x256xf32>
    %21 = vector.broadcast %17 : vector<1x256xf32> to vector<2x256xf32>
    %22 = arith.mulf %2, %21 : vector<2x256xf32>
    %23 = vector.broadcast %20 : vector<1x256xf32> to vector<2x256xf32>
    %24 = arith.addf %22, %23 : vector<2x256xf32>
    %25 = vector.extract_strided_slice %24 {offsets = [0, 0], sizes = [2, 128], strides = [1, 1]} : vector<2x256xf32> to vector<2x128xf32>
    %26 = vector.extract_strided_slice %24 {offsets = [0, 128], sizes = [2, 128], strides = [1, 1]} : vector<2x256xf32> to vector<2x128xf32>
    %27 = arith.negf %26 : vector<2x128xf32>
    %28 = math.exp %27 : vector<2x128xf32>
    %cst_14 = arith.constant 1.000000e+00 : f32
    %29 = vector.broadcast %cst_14 : f32 to vector<2x128xf32>
    %30 = arith.addf %29, %28 : vector<2x128xf32>
    %31 = arith.divf %29, %30 : vector<2x128xf32>
    %32 = arith.mulf %25, %31 : vector<2x128xf32>
    %c0_15 = arith.constant 0 : index
    %c0_16 = arith.constant 0 : index
    %33 = vector.load %arg6[%c0_15, %c0_16] : memref<2x128xf32, #tpu.memory_space<vmem>>, vector<2x128xf32>
    tpu.vector_store %arg6[%c0_15, %c0_16], %32 {strides = array<i32>} : memref<2x128xf32, #tpu.memory_space<vmem>>, vector<2x128xf32>,
    return
  }
  func.func @transform_0(%arg0: i32) -> (i32, i32) {
    %c0_i32 = arith.constant 0 : i32
    %c0_i32_0 = arith.constant 0 : i32
    %c0_i32_1 = arith.constant 0 : i32
    return %c0_i32, %c0_i32_0 : i32, i32
  }
  func.func @transform_1(%arg0: i32) -> (i32, i32) {
    %c0_i32 = arith.constant 0 : i32
    %c0_i32_0 = arith.constant 0 : i32
    %c0_i32_1 = arith.constant 0 : i32
    return %c0_i32, %c0_i32_0 : i32, i32
  }
  func.func @transform_2(%arg0: i32) -> (i32, i32) {
    %c0_i32 = arith.constant 0 : i32
    %c0_i32_0 = arith.constant 0 : i32
    %c0_i32_1 = arith.constant 0 : i32
    return %c0_i32, %c0_i32_0 : i32, i32
  }
  func.func @transform_3(%arg0: i32) -> (i32, i32) {
    %c0_i32 = arith.constant 0 : i32
    %c0_i32_0 = arith.constant 0 : i32
    %c0_i32_1 = arith.constant 0 : i32
    return %c0_i32, %c0_i32_0 : i32, i32
  }
  func.func @transform_4(%arg0: i32) -> (i32, i32) {
    %c0_i32 = arith.constant 0 : i32
    %c0_i32_0 = arith.constant 0 : i32
    %c0_i32_1 = arith.constant 0 : i32
    return %c0_i32, %c0_i32_0 : i32, i32
  }
  func.func @transform_5(%arg0: i32) -> (i32, i32) {
    %c0_i32 = arith.constant 0 : i32
    %c0_i32_0 = arith.constant 0 : i32
    %c0_i32_1 = arith.constant 0 : i32
    return %c0_i32, %c0_i32_0 : i32, i32
  }
}

</mosaic_0001>

<llo_original>
// kernel: tpu_custom_call.1
$region0: #{tpu_custom_call.1}
  #allocation0 [shape = 'u32[]', space=smem, size = 0x4, offset = 0x4, fixed_abs, tag = 'smem constant byte address 0x4 - core index']
  #allocation1 [shape = 'u32[144,128]{1,0:T(1,128)}', space=vmem, size = 0x12000, scoped, tag = 'internal scratch']
  %s0 = inlined_call_operand.hbm [shape: bf16[2,32], index: 0, kind: input, shape index: {}]
  %s1 = inlined_call_operand.hbm [shape: bf16[32,256], index: 1, kind: input, shape index: {}]
  %s2 = inlined_call_operand.vmem [shape: f32[1,256], index: 2, kind: input, shape index: {}]
  %s3 = inlined_call_operand.vmem [shape: f32[1,256], index: 3, kind: input, shape index: {}]
  %s4 = inlined_call_operand.hbm [shape: f32[256,256], index: 4, kind: input, shape index: {}]
  %s5 = inlined_call_operand.hbm [shape: f32[2,128], index: 5, kind: output, shape index: {}]
  %s6 = sld [smem:[#allocation0]]
  $region42: #{tpu_custom_call.1} parent=0
    _
  %s8 = ssub.s32 1, %s6
  %s9 = scalar_select 0, %s8, %s6
  $region1: #{tpu_custom_call.1} parent=0
    #allocation2 [shape = 'u8[512]{0}', space=vmem, size = 0x400, scoped, tag = 'input window, operand 0, single buffered']
    #allocation3 [shape = 's32[1]{0}', space=sflag, size = 0x4, scoped, tag = 'scoped memory for tpu_custom_call.1']
    #allocation4 [shape = 's32[1]{0}', space=sflag, size = 0x4, scoped, tag = 'scoped memory for tpu_custom_call.1']
    #allocation5 [shape = 'u8[16384]{0}', space=vmem, size = 0x4000, scoped, tag = 'input window, operand 1, single buffered']
    #allocation6 [shape = 's32[1]{0}', space=sflag, size = 0x4, scoped, tag = 'scoped memory for tpu_custom_call.1']
    #allocation7 [shape = 'u8[262144]{0}', space=vmem, size = 0x40000, scoped, tag = 'input window, operand 4, single buffered']
    #allocation8 [shape = 'u8[1024]{0}', space=vmem, size = 0x400, scoped, tag = 'output window, operand 0, single buffered']
    %10 = vsyncpa [#allocation3], 0
    %11 = vsyncpa [#allocation6], 0
    %12 = vsyncpa [#allocation4], 0
    // Predicated region
    $region2: #{tpu_custom_call.1} parent=1 // pred_check
      _
    $region3: #{tpu_custom_call.1} parent=1 // pred_check_branch
      %14 = sbr.rel (0) target = $region5
    $region4: #{tpu_custom_call.1} parent=1 // pred_region
      %s16 = ssub.s32 16, 16
      %17 = vsyncadd [#allocation3], %s16
      %s19 = sshll.u32 [#allocation2], 4
      %s20 = int_to_ptr.vmem [resolvable:$true] %s19
      %22 = dma.hbm_to_vmem [thread:$0]  %s0, 16, %s20, [#allocation3]
    $region5: #{tpu_custom_call.1} parent=1 // pred_fallthru
      _
    // Predicated region
    $region6: #{tpu_custom_call.1} parent=1 // pred_check
      _
    $region7: #{tpu_custom_call.1} parent=1 // pred_check_branch
      %24 = sbr.rel (0) target = $region9
    $region8: #{tpu_custom_call.1} parent=1 // pred_region
      %s26 = ssub.s32 512, 512
      %27 = vsyncadd [#allocation6], %s26
      %s28 = sshll.u32 [#allocation5], 4
      %s29 = int_to_ptr.vmem [resolvable:$true] %s28
      %34 = dma.hbm_to_vmem [thread:$0]  %s1, 512, %s29, [#allocation6], 128, 128, 8
    $region9: #{tpu_custom_call.1} parent=1 // pred_fallthru
      _
    // Predicated region
    $region10: #{tpu_custom_call.1} parent=1 // pred_check
      _
    $region11: #{tpu_custom_call.1} parent=1 // pred_check_branch
      %36 = sbr.rel (0) target = $region13
    $region12: #{tpu_custom_call.1} parent=1 // pred_region
      _
    $region13: #{tpu_custom_call.1} parent=1 // pred_fallthru
      _
    // Predicated region
    $region14: #{tpu_custom_call.1} parent=1 // pred_check
      _
    $region15: #{tpu_custom_call.1} parent=1 // pred_check_branch
      %38 = sbr.rel (0) target = $region17
    $region16: #{tpu_custom_call.1} parent=1 // pred_region
      _
    $region17: #{tpu_custom_call.1} parent=1 // pred_fallthru
      _
    // Predicated region
    $region18: #{tpu_custom_call.1} parent=1 // pred_check
      _
    $region19: #{tpu_custom_call.1} parent=1 // pred_check_branch
      %40 = sbr.rel (0) target = $region21
    $region20: #{tpu_custom_call.1} parent=1 // pred_region
      %s42 = ssub.s32 8192, 8192
      %43 = vsyncadd [#allocation6], %s42
      %s44 = sshll.u32 [#allocation7], 4
      %s45 = int_to_ptr.vmem [resolvable:$true] %s44
      %50 = dma.hbm_to_vmem [thread:$0]  %s4, 8192, %s45, [#allocation6], 256, 256, 16
    $region21: #{tpu_custom_call.1} parent=1 // pred_fallthru
      _
    // Predicated region
    $region22: #{tpu_custom_call.1} parent=1 // pred_check
      _
    $region23: #{tpu_custom_call.1} parent=1 // pred_check_branch
      %52 = sbr.rel (0) target = $region25
    $region24: #{tpu_custom_call.1} parent=1 // pred_region
      %53 = dma.done [#allocation3], 16
    $region25: #{tpu_custom_call.1} parent=1 // pred_fallthru
      _
    // Predicated region
    $region26: #{tpu_custom_call.1} parent=1 // pred_check
      _
    $region27: #{tpu_custom_call.1} parent=1 // pred_check_branch
      %55 = sbr.rel (0) target = $region29
    $region28: #{tpu_custom_call.1} parent=1 // pred_region
      %56 = dma.done [#allocation6], 512
    $region29: #{tpu_custom_call.1} parent=1 // pred_fallthru
      _
    // Predicated region
    $region30: #{tpu_custom_call.1} parent=1 // pred_check
      _
    $region31: #{tpu_custom_call.1} parent=1 // pred_check_branch
      %58 = sbr.rel (0) target = $region33
    $region32: #{tpu_custom_call.1} parent=1 // pred_region
      %59 = dma.done [#allocation6], 8192
    $region33: #{tpu_custom_call.1} parent=1 // pred_fallthru
      _
    %v61 = vld [vmem:[#allocation2] sm:$0x1]
    %v62 = vld [vmem:[#allocation5] sm:$0xff]
    %v63 = vld [vmem:[#allocation5 + $0x8] sm:$0xff]
    %v64 = vld [vmem:[#allocation5 + $0x10] sm:$0xff]
    %v65 = vld [vmem:[#allocation5 + $0x18] sm:$0xff]
    %v70 = vunpack.c.l.b16 %v62
    %v71 = vunpack.c.h.b16 %v62
    %v72 = vunpack.c.l.b16 %v63
    %v73 = vunpack.c.h.b16 %v63
    %v74 = vunpack.c.l.b16 %v64
    %v75 = vunpack.c.h.b16 %v64
    %v76 = vunpack.c.l.b16 %v65
    %v77 = vunpack.c.h.b16 %v65
    %v78 = vpack.c.b16 %v72, %v70
    %v79 = vpack.c.b16 %v73, %v71
    %v80 = vpack.c.b16 %v76, %v74
    %v81 = vpack.c.b16 %v77, %v75
    %vm86 = vcmask 261120
    %v88 = vsel %vm86, %v61, 0
    %90 = vmatprep.subr.bf16.mxu0 %v79
    %91 = vmatpush1.bf16.msra.mxu0 %v78
    %92 = vmatprep.subr.bf16.mxu0 %v81
    %93 = vmatpush1.bf16.msra.mxu0 %v80
    %94 = vmatprep.subr.bf16.mxu0 0
    %95 = vmatpush1.bf16.msra.mxu0 0
    %96 = vmatprep.subr.bf16.mxu0 0
    %97 = vmatpush1.bf16.msra.mxu0 0
    %98 = vmatprep.subr.bf16.mxu0 0
    %99 = vmatpush1.bf16.msra.mxu0 0
    %100 = vmatprep.subr.bf16.mxu0 0
    %101 = vmatpush1.bf16.msra.mxu0 0
    %102 = vmatprep.subr.bf16.mxu0 0
    %103 = vmatpush1.bf16.msra.mxu0 0
    %104 = vmatprep.subr.bf16.mxu0 0
    %105 = vmatpush1.bf16.msra.mxu0 0
    %106 = vmatprep.subr.bf16.mxu0 0
    %107 = vmatpush1.bf16.msra.mxu0 0
    %108 = vmatprep.subr.bf16.mxu0 0
    %109 = vmatpush1.bf16.msra.mxu0 0
    %110 = vmatprep.subr.bf16.mxu0 0
    %111 = vmatpush1.bf16.msra.mxu0 0
    %112 = vmatprep.subr.bf16.mxu0 0
    %113 = vmatpush1.bf16.msra.mxu0 0
    %114 = vmatprep.subr.bf16.mxu0 0
    %115 = vmatpush1.bf16.msra.mxu0 0
    %116 = vmatprep.subr.bf16.mxu0 0
    %117 = vmatpush1.bf16.msra.mxu0 0
    %118 = vmatprep.subr.bf16.mxu0 0
    %119 = vmatpush1.bf16.msra.mxu0 0
    %120 = vmatprep.subr.bf16.mxu0 0
    %121 = vmatpush1.bf16.msra.mxu0 0
    %122 = vmatprep.mubr.bf16.mxu0 0
    %123 = vmatmul.mubr.bf16.gmra.mrb[0].mxu0 %v88
    %v124 = vpop.f32.mrb[0].mxu0
    %v125 = vadd.f32 0.0, %v124
    %v126 = vpop.f32.mrb[0].mxu0
    %v127 = vadd.f32 0.0, %v126
    %v128 = vpop.f32.mrb[0].mxu0
    %v129 = vpop.f32.mrb[0].mxu0
    %130 = vdwg.mxu0
    %vm131 = vcmask 1041408
    %v132 = vsel %vm131, %v125, 0.0
    %v133 = vrot.slane %v132, 4
    %v134 = vadd.f32 %v132, %v133
    %v135 = vrot.slane %v134, 2
    %v136 = vadd.f32 %v134, %v135
    %v137 = vrot.slane %v136, 1
    %v138 = vadd.f32 %v136, %v137
    %v139 = vsel %vm131, %v127, 0.0
    %v140 = vrot.slane %v139, 4
    %v141 = vadd.f32 %v139, %v140
    %v142 = vrot.slane %v141, 2
    %v143 = vadd.f32 %v141, %v142
    %v144 = vrot.slane %v143, 1
    %v145 = vadd.f32 %v143, %v144
    %v146 = vmul.f32 %v125, %v125
    %v147 = vmul.f32 %v127, %v127
    %v148 = vsel %vm131, %v146, 0.0
    %v149 = vrot.slane %v148, 4
    %v150 = vadd.f32 %v148, %v149
    %v151 = vrot.slane %v150, 2
    %v152 = vadd.f32 %v150, %v151
    %v153 = vrot.slane %v152, 1
    %v154 = vadd.f32 %v152, %v153
    %v155 = vsel %vm131, %v147, 0.0
    %v156 = vrot.slane %v155, 4
    %v157 = vadd.f32 %v155, %v156
    %v158 = vrot.slane %v157, 2
    %v159 = vadd.f32 %v157, %v158
    %v160 = vrot.slane %v159, 1
    %v161 = vadd.f32 %v159, %v160
    %v162 = vld [vmem:[#allocation7] sm:$0xff]
    %v163 = vld [vmem:[#allocation7 + $0x8] sm:$0xff]
    %v164 = vld [vmem:[#allocation7 + $0x10] sm:$0xff]
    %v165 = vld [vmem:[#allocation7 + $0x18] sm:$0xff]
    %v166 = vld [vmem:[#allocation7 + $0x20] sm:$0xff]
    %v167 = vld [vmem:[#allocation7 + $0x28] sm:$0xff]
    %v168 = vld [vmem:[#allocation7 + $0x30] sm:$0xff]
    %v169 = vld [vmem:[#allocation7 + $0x38] sm:$0xff]
    %v170 = vld [vmem:[#allocation7 + $0x40] sm:$0xff]
    %v171 = vld [vmem:[#allocation7 + $0x48] sm:$0xff]
    %v172 = vld [vmem:[#allocation7 + $0x50] sm:$0xff]
    %v173 = vld [vmem:[#allocation7 + $0x58] sm:$0xff]
    %v174 = vld [vmem:[#allocation7 + $0x60] sm:$0xff]
    %v175 = vld [vmem:[#allocation7 + $0x68] sm:$0xff]
    %v176 = vld [vmem:[#allocation7 + $0x70] sm:$0xff]
    %v177 = vld [vmem:[#allocation7 + $0x78] sm:$0xff]
    %v178 = vld [vmem:[#allocation7 + $0x80] sm:$0xff]
    %v179 = vld [vmem:[#allocation7 + $0x88] sm:$0xff]
    %v180 = vld [vmem:[#allocation7 + $0x90] sm:$0xff]
    %v181 = vld [vmem:[#allocation7 + $0x98] sm:$0xff]
    %v182 = vld [vmem:[#allocation7 + $0xa0] sm:$0xff]
    %v183 = vld [vmem:[#allocation7 + $0xa8] sm:$0xff]
    %v184 = vld [vmem:[#allocation7 + $0xb0] sm:$0xff]
    %v185 = vld [vmem:[#allocation7 + $0xb8] sm:$0xff]
    %v186 = vld [vmem:[#allocation7 + $0xc0] sm:$0xff]
    %v187 = vld [vmem:[#allocation7 + $0xc8] sm:$0xff]
    %v188 = vld [vmem:[#allocation7 + $0xd0] sm:$0xff]
    %v189 = vld [vmem:[#allocation7 + $0xd8] sm:$0xff]
    %v190 = vld [vmem:[#allocation7 + $0xe0] sm:$0xff]
    %v191 = vld [vmem:[#allocation7 + $0xe8] sm:$0xff]
    %v192 = vld [vmem:[#allocation7 + $0xf0] sm:$0xff]
    %v193 = vld [vmem:[#allocation7 + $0xf8] sm:$0xff]
    %v194 = vld [vmem:[#allocation7 + $0x100] sm:$0xff]
    %v195 = vld [vmem:[#allocation7 + $0x108] sm:$0xff]
    %v196 = vld [vmem:[#allocation7 + $0x110] sm:$0xff]
    %v197 = vld [vmem:[#allocation7 + $0x118] sm:$0xff]
    %v198 = vld [vmem:[#allocation7 + $0x120] sm:$0xff]
    %v199 = vld [vmem:[#allocation7 + $0x128] sm:$0xff]
    %v200 = vld [vmem:[#allocation7 + $0x130] sm:$0xff]
    %v201 = vld [vmem:[#allocation7 + $0x138] sm:$0xff]
    %v202 = vld [vmem:[#allocation7 + $0x140] sm:$0xff]
    %v203 = vld [vmem:[#allocation7 + $0x148] sm:$0xff]
    %v204 = vld [vmem:[#allocation7 + $0x150] sm:$0xff]
    %v205 = vld [vmem:[#allocation7 + $0x158] sm:$0xff]
    %v206 = vld [vmem:[#allocation7 + $0x160] sm:$0xff]
    %v207 = vld [vmem:[#allocation7 + $0x168] sm:$0xff]
    %v208 = vld [vmem:[#allocation7 + $0x170] sm:$0xff]
    %v209 = vld [vmem:[#allocation7 + $0x178] sm:$0xff]
    %v210 = vld [vmem:[#allocation7 + $0x180] sm:$0xff]
    %v211 = vld [vmem:[#allocation7 + $0x188] sm:$0xff]
    %v212 = vld [vmem:[#allocation7 + $0x190] sm:$0xff]
    %v213 = vld [vmem:[#allocation7 + $0x198] sm:$0xff]
    %v214 = vld [vmem:[#allocation7 + $0x1a0] sm:$0xff]
    %v215 = vld [vmem:[#allocation7 + $0x1a8] sm:$0xff]
    %v216 = vld [vmem:[#allocation7 + $0x1b0] sm:$0xff]
    %v217 = vld [vmem:[#allocation7 + $0x1b8] sm:$0xff]
    %v218 = vld [vmem:[#allocation7 + $0x1c0] sm:$0xff]
    %v219 = vld [vmem:[#allocation7 + $0x1c8] sm:$0xff]
    %v220 = vld [vmem:[#allocation7 + $0x1d0] sm:$0xff]
    %v221 = vld [vmem:[#allocation7 + $0x1d8] sm:$0xff]
    %v222 = vld [vmem:[#allocation7 + $0x1e0] sm:$0xff]
    %v223 = vld [vmem:[#allocation7 + $0x1e8] sm:$0xff]
    %v224 = vld [vmem:[#allocation7 + $0x1f0] sm:$0xff]
    %v225 = vld [vmem:[#allocation7 + $0x1f8] sm:$0xff]
    %226 = vmatprep.subr.mxu0 %v163
    %227 = vmatpush1.msra.mxu0 %v162
    %228 = vmatprep.subr.mxu0 %v165
    %229 = vmatpush1.msra.mxu0 %v164
    %230 = vmatprep.subr.mxu0 %v167
    %231 = vmatpush1.msra.mxu0 %v166
    %232 = vmatprep.subr.mxu0 %v169
    %233 = vmatpush1.msra.mxu0 %v168
    %234 = vmatprep.subr.mxu0 %v171
    %235 = vmatpush1.msra.mxu0 %v170
    %236 = vmatprep.subr.mxu0 %v173
    %237 = vmatpush1.msra.mxu0 %v172
    %238 = vmatprep.subr.mxu0 %v175
    %239 = vmatpush1.msra.mxu0 %v174
    %240 = vmatprep.subr.mxu0 %v177
    %241 = vmatpush1.msra.mxu0 %v176
    %242 = vmatprep.subr.mxu0 %v179
    %243 = vmatpush1.msra.mxu0 %v178
    %244 = vmatprep.subr.mxu0 %v181
    %245 = vmatpush1.msra.mxu0 %v180
    %246 = vmatprep.subr.mxu0 %v183
    %247 = vmatpush1.msra.mxu0 %v182
    %248 = vmatprep.subr.mxu0 %v185
    %249 = vmatpush1.msra.mxu0 %v184
    %250 = vmatprep.subr.mxu0 %v187
    %251 = vmatpush1.msra.mxu0 %v186
    %252 = vmatprep.subr.mxu0 %v189
    %253 = vmatpush1.msra.mxu0 %v188
    %254 = vmatprep.subr.mxu0 %v191
    %255 = vmatpush1.msra.mxu0 %v190
    %256 = vmatprep.subr.mxu0 %v193
    %257 = vmatpush1.msra.mxu0 %v192
    %258 = vmatprep.subr.mxu0 %v195
    %259 = vmatpush1.msra.mxu0 %v194
    %260 = vmatprep.subr.mxu0 %v197
    %261 = vmatpush1.msra.mxu0 %v196
    %262 = vmatprep.subr.mxu0 %v199
    %263 = vmatpush1.msra.mxu0 %v198
    %264 = vmatprep.subr.mxu0 %v201
    %265 = vmatpush1.msra.mxu0 %v200
    %266 = vmatprep.subr.mxu0 %v203
    %267 = vmatpush1.msra.mxu0 %v202
    %268 = vmatprep.subr.mxu0 %v205
    %269 = vmatpush1.msra.mxu0 %v204
    %270 = vmatprep.subr.mxu0 %v207
    %271 = vmatpush1.msra.mxu0 %v206
    %272 = vmatprep.subr.mxu0 %v209
    %273 = vmatpush1.msra.mxu0 %v208
    %274 = vmatprep.subr.mxu0 %v211
    %275 = vmatpush1.msra.mxu0 %v210
    %276 = vmatprep.subr.mxu0 %v213
    %277 = vmatpush1.msra.mxu0 %v212
    %278 = vmatprep.subr.mxu0 %v215
    %279 = vmatpush1.msra.mxu0 %v214
    %280 = vmatprep.subr.mxu0 %v217
    %281 = vmatpush1.msra.mxu0 %v216
    %282 = vmatprep.subr.mxu0 %v219
    %283 = vmatpush1.msra.mxu0 %v218
    %284 = vmatprep.subr.mxu0 %v221
    %285 = vmatpush1.msra.mxu0 %v220
    %286 = vmatprep.subr.mxu0 %v223
    %287 = vmatpush1.msra.mxu0 %v222
    %288 = vmatprep.subr.mxu0 %v225
    %289 = vmatpush1.msra.mxu0 %v224
    %290 = vmatprep.mubr.f32.mxu0 %v145
    %291 = vmatmul.mubr.f32.gmra.mrb[0].mxu0 %v138
    %v292 = vpop.f32.mrb[0].mxu0
    %v293 = vadd.f32 0.0, %v292
    %v294 = vpop.f32.mrb[0].mxu0
    %v295 = vadd.f32 0.0, %v294
    %296 = vdwg.mxu0
    %297 = vmatprep.subr.mxu0 %v163
    %298 = vmatpush1.msra.mxu0 %v162
    %299 = vmatprep.subr.mxu0 %v165
    %300 = vmatpush1.msra.mxu0 %v164
    %301 = vmatprep.subr.mxu0 %v167
    %302 = vmatpush1.msra.mxu0 %v166
    %303 = vmatprep.subr.mxu0 %v169
    %304 = vmatpush1.msra.mxu0 %v168
    %305 = vmatprep.subr.mxu0 %v171
    %306 = vmatpush1.msra.mxu0 %v170
    %307 = vmatprep.subr.mxu0 %v173
    %308 = vmatpush1.msra.mxu0 %v172
    %309 = vmatprep.subr.mxu0 %v175
    %310 = vmatpush1.msra.mxu0 %v174
    %311 = vmatprep.subr.mxu0 %v177
    %312 = vmatpush1.msra.mxu0 %v176
    %313 = vmatprep.subr.mxu0 %v179
    %314 = vmatpush1.msra.mxu0 %v178
    %315 = vmatprep.subr.mxu0 %v181
    %316 = vmatpush1.msra.mxu0 %v180
    %317 = vmatprep.subr.mxu0 %v183
    %318 = vmatpush1.msra.mxu0 %v182
    %319 = vmatprep.subr.mxu0 %v185
    %320 = vmatpush1.msra.mxu0 %v184
    %321 = vmatprep.subr.mxu0 %v187
    %322 = vmatpush1.msra.mxu0 %v186
    %323 = vmatprep.subr.mxu0 %v189
    %324 = vmatpush1.msra.mxu0 %v188
    %325 = vmatprep.subr.mxu0 %v191
    %326 = vmatpush1.msra.mxu0 %v190
    %327 = vmatprep.subr.mxu0 %v193
    %328 = vmatpush1.msra.mxu0 %v192
    %329 = vmatprep.subr.mxu0 %v195
    %330 = vmatpush1.msra.mxu0 %v194
    %331 = vmatprep.subr.mxu0 %v197
    %332 = vmatpush1.msra.mxu0 %v196
    %333 = vmatprep.subr.mxu0 %v199
    %334 = vmatpush1.msra.mxu0 %v198
    %335 = vmatprep.subr.mxu0 %v201
    %336 = vmatpush1.msra.mxu0 %v200
    %337 = vmatprep.subr.mxu0 %v203
    %338 = vmatpush1.msra.mxu0 %v202
    %339 = vmatprep.subr.mxu0 %v205
    %340 = vmatpush1.msra.mxu0 %v204
    %341 = vmatprep.subr.mxu0 %v207
    %342 = vmatpush1.msra.mxu0 %v206
    %343 = vmatprep.subr.mxu0 %v209
    %344 = vmatpush1.msra.mxu0 %v208
    %345 = vmatprep.subr.mxu0 %v211
    %346 = vmatpush1.msra.mxu0 %v210
    %347 = vmatprep.subr.mxu0 %v213
    %348 = vmatpush1.msra.mxu0 %v212
    %349 = vmatprep.subr.mxu0 %v215
    %350 = vmatpush1.msra.mxu0 %v214
    %351 = vmatprep.subr.mxu0 %v217
    %352 = vmatpush1.msra.mxu0 %v216
    %353 = vmatprep.subr.mxu0 %v219
    %354 = vmatpush1.msra.mxu0 %v218
    %355 = vmatprep.subr.mxu0 %v221
    %356 = vmatpush1.msra.mxu0 %v220
    %357 = vmatprep.subr.mxu0 %v223
    %358 = vmatpush1.msra.mxu0 %v222
    %359 = vmatprep.subr.mxu0 %v225
    %360 = vmatpush1.msra.mxu0 %v224
    %361 = vmatprep.mubr.f32.mxu0 %v161
    %362 = vmatmul.mubr.f32.gmra.mrb[0].mxu0 %v154
    %v363 = vpop.f32.mrb[0].mxu0
    %v364 = vadd.f32 0.0, %v363
    %v365 = vpop.f32.mrb[0].mxu0
    %v366 = vadd.f32 0.0, %v365
    %367 = vdwg.mxu0
    %v368 = vmul.f32 %v293, %v293
    %v369 = vmul.f32 %v295, %v295
    %v370 = vsub.f32 %v364, %v368
    %v371 = vsub.f32 %v366, %v369
    %v372 = vadd.f32 %v370, 1e-05
    %v373 = vadd.f32 %v371, 1e-05
    %v374 = vrsqrt.pop %v372
    %v375 = vrsqrt.pop %v373
    %v376 = vld [vmem:[%s2] sm:$0x3]
    %v378 = vlaneseq
    %v379 = vshrl.u32 %v378, 7
    %v380 = vsub.s32 0, %v379
    %v381 = vrot.slane %v376, %v380
    %v382 = vlaneseq
    %v383 = vshrl.u32 %v382, 7
    %v384 = vsub.s32 1, %v383
    %v385 = vrot.slane %v376, %v384
    %v388 = vmul.f32 %v374, %v381
    %v389 = vmul.f32 %v375, %v385
    %v390 = vld [vmem:[%s3] sm:$0x3]
    %v391 = vmul.f32 %v293, %v388
    %v392 = vmul.f32 %v295, %v389
    %v395 = vcombine.low %v391, %v392
    %v397 = vunpack.c.l.s4 1966171168
    %v398 = vunpack.c.0.s8 %v397
    %v399 = vlaneseq
    %v400 = vshrl.u32 %v399, 7
    %v401 = vsub.s32 %v398, %v400
    %v402 = vrot.slane %v395, %v401
    %v404 = vunpack.c.l.s4 1966171168
    %v405 = vunpack.c.0.s8 %v404
    %v406 = vlaneseq
    %v407 = vshrl.u32 %v406, 7
    %v408 = vsub.s32 %v405, %v407
    %v409 = vrot.slane %v402, %v408
    %v411 = vsub.f32 %v390, %v409
    %v412 = vlaneseq
    %v413 = vshrl.u32 %v412, 7
    %v414 = vsub.s32 0, %v413
    %v415 = vrot.slane %v388, %v414
    %v416 = vlaneseq
    %v417 = vshrl.u32 %v416, 7
    %v418 = vsub.s32 0, %v417
    %v419 = vrot.slane %v389, %v418
    %v420 = vmul.f32 %v125, %v415
    %v421 = vmul.f32 %v127, %v419
    %v423 = vlaneseq
    %v424 = vshrl.u32 %v423, 7
    %v425 = vsub.s32 0, %v424
    %v426 = vrot.slane %v411, %v425
    %v427 = vlaneseq
    %v428 = vshrl.u32 %v427, 7
    %v429 = vsub.s32 1, %v428
    %v430 = vrot.slane %v411, %v429
    %v433 = vadd.f32 %v420, %v426
    %v434 = vadd.f32 %v421, %v430
    %v435 = vxor.u32 %v434, 2147483648
    %v436 = vmul.f32 %v435, 1.442695
    %v437 = vpow.pop %v436
    %v438 = vadd.f32 %v437, 1.0
    %v439 = vrcp.pop %v438
    %v440 = vmul.f32 1.0, %v439
    %v441 = vmul.f32 %v433, %v440
    %442 = vst [vmem:[#allocation8] sm:$0x3] %v441
    // Predicated region
    $region34: #{tpu_custom_call.1} parent=1 // pred_check
      _
    $region35: #{tpu_custom_call.1} parent=1 // pred_check_branch
      %444 = sbr.rel (0) target = $region37
    $region36: #{tpu_custom_call.1} parent=1 // pred_region
      %s446 = ssub.s32 32, 32
      %447 = vsyncadd [#allocation4], %s446
      %s449 = sshll.u32 [#allocation8], 4
      %s450 = int_to_ptr.vmem [resolvable:$true] %s449
      %452 = dma.vmem_to_hbm [thread:$0]  %s450, 32, %s5, [#allocation4]
    $region37: #{tpu_custom_call.1} parent=1 // pred_fallthru
      _
    // Predicated region
    $region38: #{tpu_custom_call.1} parent=1 // pred_check
      _
    $region39: #{tpu_custom_call.1} parent=1 // pred_check_branch
      %454 = sbr.rel (0) target = $region41
    $region40: #{tpu_custom_call.1} parent=1 // pred_region
      %455 = dma.done [#allocation4], 32
    $region41: #{tpu_custom_call.1} parent=1 // pred_fallthru
      _
    %456 = vsyncpa [#allocation3], 1
    %457 = vsyncpa [#allocation6], 1
    %458 = vsyncpa [#allocation4], 1

</llo_original>
